<compile_context>
chip_gen: v7x
topology: tpu7x:2x2x1
jax: 0.10.0
libtpu: 0.0.40
codegen_flags: <defaults>
</compile_context>

<pallas_src>
import functools

import jax
import jax.numpy as jnp
from jax.experimental import pallas as pl
from jax.experimental.pallas import tpu as pltpu

IN_F = 13
HID_F = 50
OUT_F = 4


def _mlp_kernel(x_ref, w1_ref, b1_ref, w2_ref, b2_ref, o_ref):
    # Layer 1: (TB, 13) @ (13, 50) on the MXU, f32 accumulation regardless of input dtype.
    h = jnp.dot(x_ref[...], w1_ref[...], preferred_element_type=jnp.float32)
    h = h + b1_ref[...]                       # (1, 50) bias broadcasts over the tile
    # Exact sigmoid in f32: exp on the EUP + f32 divide. (approx reciprocal dropped per
    # the correctness review -- this kernel is memory-bound, the EUP/VPU have slack.)
    s = 1.0 / (1.0 + jnp.exp(-h))
    # Layer 2: (TB, 50) @ (50, 4) fully in f32 (w2 stays f32; traffic is negligible,
    # accuracy is better than compounding a bf16 cast of the activations).
    out = jnp.dot(s, w2_ref[...], preferred_element_type=jnp.float32)
    out = out + b2_ref[...]
    o_ref[...] = out.astype(o_ref.dtype)


def _round_up(n, m):
    return ((n + m - 1) // m) * m


def _cdiv(a, b):
    return (a + b - 1) // b


@functools.partial(jax.jit, static_argnames=("block_rows", "use_bf16"))
def network_2_forward(x, w1, b1, w2, b2, *, block_rows=8192, use_bf16=True):
    """x: (B, 13); w1: (13, 50); b1: (50,); w2: (50, 4); b2: (4,). Returns (B, 4) f32.

    Weights are stored transposed vs PyTorch, i.e. (in_features, out_features).
    block_rows: batch rows per grid step. 8192 default; sweep 8192-16384 (v7x: keep the
    double-buffered footprint under ~32 MiB; v6e/v5e can go to 32768).
    """
    B = x.shape[0]

    # Batch tile: multiple of 32 (>= bf16's 16-sublane minimum, future-proof for a
    # lane-dense output view), capped so tiny batches don't over-pad.
    rows = _round_up(max(B, 1), 32)
    tb = min(_round_up(block_rows, 32), rows)
    # v7x megacore: if the whole (large) batch would fit in a single step, split it in
    # two so dimension_semantics=("parallel",) can shard across both TensorCores.
    if tb == rows and rows >= 8192:
        tb = _round_up(_cdiv(rows, 2), 32)
    b_pad = _round_up(B, tb)

    if use_bf16:
        # Halves the dominant HBM read (x). Most effective when the producer already
        # emits bf16 / the cast fuses; accumulation stays f32 inside the kernel.
        x = x.astype(jnp.bfloat16)
        w1 = w1.astype(jnp.bfloat16)
    else:
        x = x.astype(jnp.float32)
        w1 = w1.astype(jnp.float32)
    if b_pad != B:
        x = jnp.pad(x, ((0, b_pad - B), (0, 0)))

    w2 = w2.astype(jnp.float32)
    b1_2d = b1.astype(jnp.float32).reshape(1, HID_F)
    b2_2d = b2.astype(jnp.float32).reshape(1, OUT_F)

    grid = (b_pad // tb,)

    # True (8,128)-lane-tiled VMEM footprint: each (tb, 13|4) block pads to 128 lanes.
    x_block_bytes = tb * 128 * (2 if use_bf16 else 4)
    o_block_bytes = tb * 128 * 4
    vmem_needed = 2 * (x_block_bytes + o_block_bytes) + (64 << 10)   # + weights/biases
    vmem_limit = int(min(max(vmem_needed + (4 << 20), 16 << 20), 96 << 20))

    x_itemsize = 2 if use_bf16 else 4
    cost = pl.CostEstimate(
        flops=2 * b_pad * (IN_F * HID_F + HID_F * OUT_F),
        transcendentals=b_pad * HID_F,
        bytes_accessed=int(
            b_pad * (IN_F * x_itemsize + OUT_F * 4)
            + IN_F * HID_F * x_itemsize + HID_F * OUT_F * 4 + (HID_F + OUT_F) * 4
        ),
    )

    out = pl.pallas_call(
        _mlp_kernel,
        out_shape=jax.ShapeDtypeStruct((b_pad, OUT_F), jnp.float32),
        grid=grid,
        in_specs=[
            # Streamed over the batch grid (pipelined / double-buffered by Pallas).
            pl.BlockSpec((tb, IN_F), lambda i: (i, 0)),
            # Constant index_maps -> weights/biases stay VMEM-resident across steps.
            pl.BlockSpec((IN_F, HID_F), lambda i: (0, 0)),
            pl.BlockSpec((1, HID_F), lambda i: (0, 0)),
            pl.BlockSpec((HID_F, OUT_F), lambda i: (0, 0)),
            pl.BlockSpec((1, OUT_F), lambda i: (0, 0)),
        ],
        out_specs=pl.BlockSpec((tb, OUT_F), lambda i: (i, 0)),
        compiler_params=pltpu.CompilerParams(
            dimension_semantics=("parallel",),      # v7x megacore sharding of the grid
            vmem_limit_bytes=vmem_limit,
        ),
        cost_estimate=cost,
    )(x, w1, b1_2d, w2, b2_2d)

    return out[:B]


def init_params(key):
    """Deterministic init mimicking torch.nn.Linear (uniform(-1/sqrt(fan_in), +...))."""
    k1, k2, k3, k4 = jax.random.split(key, 4)
    bound1 = 1.0 / jnp.sqrt(jnp.float32(IN_F))
    bound2 = 1.0 / jnp.sqrt(jnp.float32(HID_F))
    # Stored transposed relative to PyTorch: (in, out).
    w1 = jax.random.uniform(k1, (IN_F, HID_F), jnp.float32, -bound1, bound1)
    b1 = jax.random.uniform(k2, (HID_F,), jnp.float32, -bound1, bound1)
    w2 = jax.random.uniform(k3, (HID_F, OUT_F), jnp.float32, -bound2, bound2)
    b2 = jax.random.uniform(k4, (OUT_F,), jnp.float32, -bound2, bound2)
    return w1, b1, w2, b2


def reference_forward(x, w1, b1, w2, b2):
    h = jax.nn.sigmoid(x @ w1 + b1)
    return h @ w2 + b2


if __name__ == "__main__":
    key = jax.random.PRNGKey(0)
    kx, kp = jax.random.split(key)
    w1, b1, w2, b2 = init_params(kp)

    # Small-batch check (single grid step), exact-sigmoid f32 path.
    B = 8
    x = jax.random.normal(kx, (B, IN_F), jnp.float32)
    out = jax.block_until_ready(network_2_forward(x, w1, b1, w2, b2, use_bf16=False))
    ref = reference_forward(x, w1, b1, w2, b2)
    assert out.shape == (B, OUT_F), out.shape
    assert jnp.allclose(out, ref, atol=1e-2, rtol=1e-2), "f32 path mismatch vs reference"

    # Multi-step grid + batch padding check (B2 not a multiple of the row tile).
    B2 = 2072
    x2 = jax.random.normal(kx, (B2, IN_F), jnp.float32)
    out2 = jax.block_until_ready(
        network_2_forward(x2, w1, b1, w2, b2, block_rows=1024, use_bf16=False))
    ref2 = reference_forward(x2, w1, b1, w2, b2)
    assert out2.shape == (B2, OUT_F), out2.shape
    assert jnp.allclose(out2, ref2, atol=1e-2, rtol=1e-2), "gridded f32 path mismatch"

    # Default path: bf16 x / w1 (halved HBM read), f32 layer 2 — looser tolerance.
    out3 = jax.block_until_ready(network_2_forward(x2, w1, b1, w2, b2))
    assert out3.shape == (B2, OUT_F), out3.shape
    assert jnp.allclose(out3, ref2, atol=5e-2, rtol=5e-2), "bf16 path mismatch"

    print("KERNEL_OK")
</pallas_src>

<mosaic_0001>
module attributes {stable_mosaic.version = 11 : i64} {
  func.func @_mlp_kernel(%arg0: i32, %arg1: memref<32x13xf32, #tpu.memory_space<vmem>>, %arg2: memref<13x50xf32, #tpu.memory_space<vmem>>, %arg3: memref<1x50xf32, #tpu.memory_space<vmem>>, %arg4: memref<50x4xf32, #tpu.memory_space<vmem>>, %arg5: memref<1x4xf32, #tpu.memory_space<vmem>>, %arg6: memref<32x4xf32, #tpu.memory_space<vmem>>) attributes {dimension_semantics = [#tpu.dimension_semantics<parallel>], iteration_bounds = array<i64: 1>, scalar_prefetch = 0 : i64, scratch_operands = 0 : i64, tpu.core_type = #tpu.core_type<tc>, window_params = [{transform_indices = @transform_0, window_bounds = array<i64: 32, 13>}, {pipeline_mode = #tpu.pipeline_mode<synchronous>, transform_indices = @transform_1, window_bounds = array<i64: 13, 50>}, {pipeline_mode = #tpu.pipeline_mode<synchronous>, transform_indices = @transform_2, window_bounds = array<i64: 1, 50>}, {pipeline_mode = #tpu.pipeline_mode<synchronous>, transform_indices = @transform_3, window_bounds = array<i64: 50, 4>}, {pipeline_mode = #tpu.pipeline_mode<synchronous>, transform_indices = @transform_4, window_bounds = array<i64: 1, 4>}, {transform_indices = @transform_5, window_bounds = array<i64: 32, 4>}]} {
    %c0 = arith.constant 0 : index
    %c0_0 = arith.constant 0 : index
    %0 = vector.load %arg1[%c0, %c0_0] : memref<32x13xf32, #tpu.memory_space<vmem>>, vector<32x13xf32>
    %c0_1 = arith.constant 0 : index
    %c0_2 = arith.constant 0 : index
    %1 = vector.load %arg2[%c0_1, %c0_2] : memref<13x50xf32, #tpu.memory_space<vmem>>, vector<13x50xf32>
    %cst = arith.constant dense<0.000000e+00> : vector<32x50xf32>
    %2 = tpu.matmul %0, %1, %cst {dimension_numbers = #tpu.dot_dimension_numbers<[1], [0], [0], [1], [0, 0, 1, 1], [], []>} : vector<32x13xf32>, vector<13x50xf32>, vector<32x50xf32> -> vector<32x50xf32>
    %c0_3 = arith.constant 0 : index
    %c0_4 = arith.constant 0 : index
    %3 = vector.load %arg3[%c0_3, %c0_4] : memref<1x50xf32, #tpu.memory_space<vmem>>, vector<1x50xf32>
    %4 = vector.broadcast %3 : vector<1x50xf32> to vector<32x50xf32>
    %5 = arith.addf %2, %4 : vector<32x50xf32>
    %cst_5 = arith.constant 0.000000e+00 : f32
    %6 = vector.broadcast %cst_5 : f32 to vector<32x50xf32>
    %7 = arith.subf %6, %5 : vector<32x50xf32>
    %8 = math.exp %7 : vector<32x50xf32>
    %cst_6 = arith.constant 1.000000e+00 : f32
    %9 = vector.broadcast %cst_6 : f32 to vector<32x50xf32>
    %10 = arith.addf %9, %8 : vector<32x50xf32>
    %cst_7 = arith.constant 1.000000e+00 : f32
    %11 = vector.broadcast %cst_7 : f32 to vector<32x50xf32>
    %12 = arith.divf %11, %10 : vector<32x50xf32>
    %c0_8 = arith.constant 0 : index
    %c0_9 = arith.constant 0 : index
    %13 = vector.load %arg4[%c0_8, %c0_9] : memref<50x4xf32, #tpu.memory_space<vmem>>, vector<50x4xf32>
    %cst_10 = arith.constant dense<0.000000e+00> : vector<32x4xf32>
    %14 = tpu.matmul %12, %13, %cst_10 {dimension_numbers = #tpu.dot_dimension_numbers<[1], [0], [0], [1], [0, 0, 1, 1], [], []>} : vector<32x50xf32>, vector<50x4xf32>, vector<32x4xf32> -> vector<32x4xf32>
    %c0_11 = arith.constant 0 : index
    %c0_12 = arith.constant 0 : index
    %15 = vector.load %arg5[%c0_11, %c0_12] : memref<1x4xf32, #tpu.memory_space<vmem>>, vector<1x4xf32>
    %16 = vector.broadcast %15 : vector<1x4xf32> to vector<32x4xf32>
    %17 = arith.addf %14, %16 : vector<32x4xf32>
    %c0_13 = arith.constant 0 : index
    %c0_14 = arith.constant 0 : index
    %18 = vector.load %arg6[%c0_13, %c0_14] : memref<32x4xf32, #tpu.memory_space<vmem>>, vector<32x4xf32>
    tpu.vector_store %arg6[%c0_13, %c0_14], %17 {strides = array<i32>} : memref<32x4xf32, #tpu.memory_space<vmem>>, vector<32x4xf32>,
    return
  }
  func.func @transform_0(%arg0: i32) -> (i32, i32) {
    %c0_i32 = arith.constant 0 : i32
    %c0_i32_0 = arith.constant 0 : i32
    return %arg0, %c0_i32 : i32, i32
  }
  func.func @transform_1(%arg0: i32) -> (i32, i32) {
    %c0_i32 = arith.constant 0 : i32
    %c0_i32_0 = arith.constant 0 : i32
    %c0_i32_1 = arith.constant 0 : i32
    return %c0_i32, %c0_i32_0 : i32, i32
  }
  func.func @transform_2(%arg0: i32) -> (i32, i32) {
    %c0_i32 = arith.constant 0 : i32
    %c0_i32_0 = arith.constant 0 : i32
    %c0_i32_1 = arith.constant 0 : i32
    return %c0_i32, %c0_i32_0 : i32, i32
  }
  func.func @transform_3(%arg0: i32) -> (i32, i32) {
    %c0_i32 = arith.constant 0 : i32
    %c0_i32_0 = arith.constant 0 : i32
    %c0_i32_1 = arith.constant 0 : i32
    return %c0_i32, %c0_i32_0 : i32, i32
  }
  func.func @transform_4(%arg0: i32) -> (i32, i32) {
    %c0_i32 = arith.constant 0 : i32
    %c0_i32_0 = arith.constant 0 : i32
    %c0_i32_1 = arith.constant 0 : i32
    return %c0_i32, %c0_i32_0 : i32, i32
  }
  func.func @transform_5(%arg0: i32) -> (i32, i32) {
    %c0_i32 = arith.constant 0 : i32
    %c0_i32_0 = arith.constant 0 : i32
    return %arg0, %c0_i32 : i32, i32
  }
}

</mosaic_0001>

<llo_original>
// kernel: network_2_forward.1
$region0: #{network_2_forward.1}
  #allocation0 [shape = 'u32[]', space=smem, size = 0x4, offset = 0x4, fixed_abs, tag = 'smem constant byte address 0x4 - core index']
  #allocation1 [shape = 'u32[144,128]{1,0:T(1,128)}', space=vmem, size = 0x12000, scoped, tag = 'internal scratch']
  %s0 = inlined_call_operand.vmem [shape: f32[32,13], index: 0, kind: input, shape index: {}]
  %s1 = inlined_call_operand.vmem [shape: f32[13,50], index: 1, kind: input, shape index: {}]
  %s2 = inlined_call_operand.vmem [shape: f32[1,50], index: 2, kind: input, shape index: {}]
  %s3 = inlined_call_operand.vmem [shape: f32[50,4], index: 3, kind: input, shape index: {}]
  %s4 = inlined_call_operand.vmem [shape: f32[1,4], index: 4, kind: input, shape index: {}]
  %s5 = inlined_call_operand.vmem [shape: f32[32,4], index: 5, kind: output, shape index: {}]
  %s6 = sld [smem:[#allocation0]]
  $region30: #{network_2_forward.1} parent=0
    _
  %s8 = ssub.s32 1, %s6
  %s9 = scalar_select 0, %s8, %s6
  // Predicated region
  $region2: #{network_2_forward.1} parent=0 // pred_check
    _
  $region3: #{network_2_forward.1} parent=0 // pred_check_branch
    %11 = sbr.rel (0) target = $region5
  $region4: #{network_2_forward.1} parent=0 // pred_region
    _
  $region5: #{network_2_forward.1} parent=0 // pred_fallthru
    _
  // Predicated region
  $region6: #{network_2_forward.1} parent=0 // pred_check
    _
  $region7: #{network_2_forward.1} parent=0 // pred_check_branch
    %13 = sbr.rel (0) target = $region9
  $region8: #{network_2_forward.1} parent=0 // pred_region
    _
  $region9: #{network_2_forward.1} parent=0 // pred_fallthru
    _
  // Predicated region
  $region10: #{network_2_forward.1} parent=0 // pred_check
    _
  $region11: #{network_2_forward.1} parent=0 // pred_check_branch
    %15 = sbr.rel (0) target = $region13
  $region12: #{network_2_forward.1} parent=0 // pred_region
    _
  $region13: #{network_2_forward.1} parent=0 // pred_fallthru
    _
  // Predicated region
  $region14: #{network_2_forward.1} parent=0 // pred_check
    _
  $region15: #{network_2_forward.1} parent=0 // pred_check_branch
    %17 = sbr.rel (0) target = $region17
  $region16: #{network_2_forward.1} parent=0 // pred_region
    _
  $region17: #{network_2_forward.1} parent=0 // pred_fallthru
    _
  // Predicated region
  $region18: #{network_2_forward.1} parent=0 // pred_check
    _
  $region19: #{network_2_forward.1} parent=0 // pred_check_branch
    %19 = sbr.rel (0) target = $region21
  $region20: #{network_2_forward.1} parent=0 // pred_region
    _
  $region21: #{network_2_forward.1} parent=0 // pred_fallthru
    _
  %v20 = vld [vmem:[%s0] sm:$0xff]
  %v21 = vld [vmem:[%s0 + $0x8] sm:$0xff]
  %v22 = vld [vmem:[%s0 + $0x10] sm:$0xff]
  %v23 = vld [vmem:[%s0 + $0x18] sm:$0xff]
  %v24 = vld [vmem:[%s1] sm:$0xff]
  %v25 = vld [vmem:[%s1 + $0x8] sm:$0x1f]
  %v26 = vld [vmem:[%s2] sm:$0x1]
  %v28 = vlaneseq
  %v29 = vshrl.u32 %v28, 7
  %v30 = vsub.s32 0, %v29
  %v31 = vrot.slane %v26, %v30
  %vm33 = vcmask 105472
  %v35 = vsel %vm33, %v20, 0
  %v38 = vsel %vm33, %v21, 0
  %v41 = vsel %vm33, %v22, 0
  %v44 = vsel %vm33, %v23, 0
  %vm46 = vcmask 1044480
  %v48 = vsel %vm46, %v25, 0
  %50 = vmatprep.subr.mxu0 0.0
  %51 = vmatpush1.msra.mxu0 %v24
  %52 = vmatprep.subr.mxu0 0.0
  %53 = vmatpush1.msra.mxu0 %v48
  %54 = vmatprep.subr.mxu0 0.0
  %55 = vmatpush1.msra.mxu0 0.0
  %56 = vmatprep.subr.mxu0 0.0
  %57 = vmatpush1.msra.mxu0 0.0
  %58 = vmatprep.subr.mxu0 0.0
  %59 = vmatpush1.msra.mxu0 0.0
  %60 = vmatprep.subr.mxu0 0.0
  %61 = vmatpush1.msra.mxu0 0.0
  %62 = vmatprep.subr.mxu0 0.0
  %63 = vmatpush1.msra.mxu0 0.0
  %64 = vmatprep.subr.mxu0 0.0
  %65 = vmatpush1.msra.mxu0 0.0
  %66 = vmatprep.subr.mxu0 0.0
  %67 = vmatpush1.msra.mxu0 0.0
  %68 = vmatprep.subr.mxu0 0.0
  %69 = vmatpush1.msra.mxu0 0.0
  %70 = vmatprep.subr.mxu0 0.0
  %71 = vmatpush1.msra.mxu0 0.0
  %72 = vmatprep.subr.mxu0 0.0
  %73 = vmatpush1.msra.mxu0 0.0
  %74 = vmatprep.subr.mxu0 0.0
  %75 = vmatpush1.msra.mxu0 0.0
  %76 = vmatprep.subr.mxu0 0.0
  %77 = vmatpush1.msra.mxu0 0.0
  %78 = vmatprep.subr.mxu0 0.0
  %79 = vmatpush1.msra.mxu0 0.0
  %80 = vmatprep.subr.mxu0 0.0
  %81 = vmatpush1.msra.mxu0 0.0
  %82 = vmatprep.subr.mxu0 0.0
  %83 = vmatpush1.msra.mxu0 0.0
  %84 = vmatprep.subr.mxu0 0.0
  %85 = vmatpush1.msra.mxu0 0.0
  %86 = vmatprep.subr.mxu0 0.0
  %87 = vmatpush1.msra.mxu0 0.0
  %88 = vmatprep.subr.mxu0 0.0
  %89 = vmatpush1.msra.mxu0 0.0
  %90 = vmatprep.subr.mxu0 0.0
  %91 = vmatpush1.msra.mxu0 0.0
  %92 = vmatprep.subr.mxu0 0.0
  %93 = vmatpush1.msra.mxu0 0.0
  %94 = vmatprep.subr.mxu0 0.0
  %95 = vmatpush1.msra.mxu0 0.0
  %96 = vmatprep.subr.mxu0 0.0
  %97 = vmatpush1.msra.mxu0 0.0
  %98 = vmatprep.subr.mxu0 0.0
  %99 = vmatpush1.msra.mxu0 0.0
  %100 = vmatprep.subr.mxu0 0.0
  %101 = vmatpush1.msra.mxu0 0.0
  %102 = vmatprep.subr.mxu0 0.0
  %103 = vmatpush1.msra.mxu0 0.0
  %104 = vmatprep.subr.mxu0 0.0
  %105 = vmatpush1.msra.mxu0 0.0
  %106 = vmatprep.subr.mxu0 0.0
  %107 = vmatpush1.msra.mxu0 0.0
  %108 = vmatprep.subr.mxu0 0.0
  %109 = vmatpush1.msra.mxu0 0.0
  %110 = vmatprep.subr.mxu0 0.0
  %111 = vmatpush1.msra.mxu0 0.0
  %112 = vmatprep.subr.mxu0 0.0
  %113 = vmatpush1.msra.mxu0 0.0
  %114 = vmatprep.mubr.f32.mxu0 0.0
  %115 = vmatmul.mubr.f32.gmra.mrb[0].mxu0 %v35
  %v116 = vpop.f32.mrb[0].mxu0
  %v117 = vadd.f32 %v31, %v116
  %v118 = vpop.f32.mrb[0].mxu0
  %119 = vmatprep.mubr.f32.mxu0 0.0
  %120 = vmatmul.mubr.f32.gmra.mrb[0].mxu0 %v38
  %v121 = vpop.f32.mrb[0].mxu0
  %v122 = vadd.f32 %v31, %v121
  %v123 = vpop.f32.mrb[0].mxu0
  %124 = vmatprep.mubr.f32.mxu0 0.0
  %125 = vmatmul.mubr.f32.gmra.mrb[0].mxu0 %v41
  %v126 = vpop.f32.mrb[0].mxu0
  %v127 = vadd.f32 %v31, %v126
  %v128 = vpop.f32.mrb[0].mxu0
  %129 = vmatprep.mubr.f32.mxu0 0.0
  %130 = vmatmul.mubr.f32.gmra.mrb[0].mxu0 %v44
  %v131 = vpop.f32.mrb[0].mxu0
  %v132 = vadd.f32 %v31, %v131
  %v133 = vpop.f32.mrb[0].mxu0
  %134 = vdwg.mxu0
  %v135 = vsub.f32 0.0, %v117
  %v136 = vsub.f32 0.0, %v122
  %v137 = vsub.f32 0.0, %v127
  %v138 = vsub.f32 0.0, %v132
  %v139 = vmul.f32 %v135, 1.442695
  %v140 = vpow.pop %v139
  %v141 = vmul.f32 %v136, 1.442695
  %v142 = vpow.pop %v141
  %v143 = vmul.f32 %v137, 1.442695
  %v144 = vpow.pop %v143
  %v145 = vmul.f32 %v138, 1.442695
  %v146 = vpow.pop %v145
  %v147 = vadd.f32 %v140, 1.0
  %v148 = vadd.f32 %v142, 1.0
  %v149 = vadd.f32 %v144, 1.0
  %v150 = vadd.f32 %v146, 1.0
  %v151 = vrcp.pop %v147
  %v152 = vmul.f32 1.0, %v151
  %v153 = vrcp.pop %v148
  %v154 = vmul.f32 1.0, %v153
  %v155 = vrcp.pop %v149
  %v156 = vmul.f32 1.0, %v155
  %v157 = vrcp.pop %v150
  %v158 = vmul.f32 1.0, %v157
  %v159 = vld [vmem:[%s3] sm:$0xff]
  %v160 = vld [vmem:[%s3 + $0x8] sm:$0xff]
  %v161 = vld [vmem:[%s3 + $0x10] sm:$0xff]
  %v162 = vld [vmem:[%s3 + $0x18] sm:$0xff]
  %v163 = vld [vmem:[%s3 + $0x20] sm:$0xff]
  %v164 = vld [vmem:[%s3 + $0x28] sm:$0xff]
  %v165 = vld [vmem:[%s3 + $0x30] sm:$0x3]
  %v166 = vld [vmem:[%s4] sm:$0x1]
  %v168 = vlaneseq
  %v169 = vshrl.u32 %v168, 7
  %v170 = vsub.s32 0, %v169
  %v171 = vrot.slane %v166, %v170
  %vm173 = vcmask 408576
  %v175 = vsel %vm173, %v152, 0
  %v178 = vsel %vm173, %v154, 0
  %v181 = vsel %vm173, %v156, 0
  %v184 = vsel %vm173, %v158, 0
  %vm186 = vcmask 1041408
  %v188 = vsel %vm186, %v165, 0
  %190 = vmatprep.subr.mxu0 0.0
  %191 = vmatpush1.msra.mxu0 %v159
  %192 = vmatprep.subr.mxu0 0.0
  %193 = vmatpush1.msra.mxu0 %v160
  %194 = vmatprep.subr.mxu0 0.0
  %195 = vmatpush1.msra.mxu0 %v161
  %196 = vmatprep.subr.mxu0 0.0
  %197 = vmatpush1.msra.mxu0 %v162
  %198 = vmatprep.subr.mxu0 0.0
  %199 = vmatpush1.msra.mxu0 %v163
  %200 = vmatprep.subr.mxu0 0.0
  %201 = vmatpush1.msra.mxu0 %v164
  %202 = vmatprep.subr.mxu0 0.0
  %203 = vmatpush1.msra.mxu0 %v188
  %204 = vmatprep.subr.mxu0 0.0
  %205 = vmatpush1.msra.mxu0 0.0
  %206 = vmatprep.subr.mxu0 0.0
  %207 = vmatpush1.msra.mxu0 0.0
  %208 = vmatprep.subr.mxu0 0.0
  %209 = vmatpush1.msra.mxu0 0.0
  %210 = vmatprep.subr.mxu0 0.0
  %211 = vmatpush1.msra.mxu0 0.0
  %212 = vmatprep.subr.mxu0 0.0
  %213 = vmatpush1.msra.mxu0 0.0
  %214 = vmatprep.subr.mxu0 0.0
  %215 = vmatpush1.msra.mxu0 0.0
  %216 = vmatprep.subr.mxu0 0.0
  %217 = vmatpush1.msra.mxu0 0.0
  %218 = vmatprep.subr.mxu0 0.0
  %219 = vmatpush1.msra.mxu0 0.0
  %220 = vmatprep.subr.mxu0 0.0
  %221 = vmatpush1.msra.mxu0 0.0
  %222 = vmatprep.subr.mxu0 0.0
  %223 = vmatpush1.msra.mxu0 0.0
  %224 = vmatprep.subr.mxu0 0.0
  %225 = vmatpush1.msra.mxu0 0.0
  %226 = vmatprep.subr.mxu0 0.0
  %227 = vmatpush1.msra.mxu0 0.0
  %228 = vmatprep.subr.mxu0 0.0
  %229 = vmatpush1.msra.mxu0 0.0
  %230 = vmatprep.subr.mxu0 0.0
  %231 = vmatpush1.msra.mxu0 0.0
  %232 = vmatprep.subr.mxu0 0.0
  %233 = vmatpush1.msra.mxu0 0.0
  %234 = vmatprep.subr.mxu0 0.0
  %235 = vmatpush1.msra.mxu0 0.0
  %236 = vmatprep.subr.mxu0 0.0
  %237 = vmatpush1.msra.mxu0 0.0
  %238 = vmatprep.subr.mxu0 0.0
  %239 = vmatpush1.msra.mxu0 0.0
  %240 = vmatprep.subr.mxu0 0.0
  %241 = vmatpush1.msra.mxu0 0.0
  %242 = vmatprep.subr.mxu0 0.0
  %243 = vmatpush1.msra.mxu0 0.0
  %244 = vmatprep.subr.mxu0 0.0
  %245 = vmatpush1.msra.mxu0 0.0
  %246 = vmatprep.subr.mxu0 0.0
  %247 = vmatpush1.msra.mxu0 0.0
  %248 = vmatprep.subr.mxu0 0.0
  %249 = vmatpush1.msra.mxu0 0.0
  %250 = vmatprep.subr.mxu0 0.0
  %251 = vmatpush1.msra.mxu0 0.0
  %252 = vmatprep.subr.mxu0 0.0
  %253 = vmatpush1.msra.mxu0 0.0
  %254 = vmatprep.mubr.f32.mxu0 0.0
  %255 = vmatmul.mubr.f32.gmra.mrb[0].mxu0 %v175
  %v256 = vpop.f32.mrb[0].mxu0
  %v257 = vadd.f32 %v171, %v256
  %v258 = vpop.f32.mrb[0].mxu0
  %259 = vmatprep.mubr.f32.mxu0 0.0
  %260 = vmatmul.mubr.f32.gmra.mrb[0].mxu0 %v178
  %v261 = vpop.f32.mrb[0].mxu0
  %v262 = vadd.f32 %v171, %v261
  %v263 = vpop.f32.mrb[0].mxu0
  %264 = vmatprep.mubr.f32.mxu0 0.0
  %265 = vmatmul.mubr.f32.gmra.mrb[0].mxu0 %v181
  %v266 = vpop.f32.mrb[0].mxu0
  %v267 = vadd.f32 %v171, %v266
  %v268 = vpop.f32.mrb[0].mxu0
  %269 = vmatprep.mubr.f32.mxu0 0.0
  %270 = vmatmul.mubr.f32.gmra.mrb[0].mxu0 %v184
  %v271 = vpop.f32.mrb[0].mxu0
  %v272 = vadd.f32 %v171, %v271
  %v273 = vpop.f32.mrb[0].mxu0
  %274 = vdwg.mxu0
  %vm275 = vcmask 31744
  %276 = vst.msk [vmem:[%s5] sm:$0xff] %vm275, %v257
  %277 = vst.msk [vmem:[%s5 + $0x8] sm:$0xff] %vm275, %v262
  %278 = vst.msk [vmem:[%s5 + $0x10] sm:$0xff] %vm275, %v267
  %279 = vst.msk [vmem:[%s5 + $0x18] sm:$0xff] %vm275, %v272
  // Predicated region
  $region22: #{network_2_forward.1} parent=0 // pred_check
    _
  $region23: #{network_2_forward.1} parent=0 // pred_check_branch
    %281 = sbr.rel (0) target = $region25
  $region24: #{network_2_forward.1} parent=0 // pred_region
    _
  $region25: #{network_2_forward.1} parent=0 // pred_fallthru
    _
  // Predicated region
  $region26: #{network_2_forward.1} parent=0 // pred_check
    _
  $region27: #{network_2_forward.1} parent=0 // pred_check_branch
    %283 = sbr.rel (0) target = $region29
  $region28: #{network_2_forward.1} parent=0 // pred_region
    _
  $region29: #{network_2_forward.1} parent=0 // pred_fallthru
    _

</llo_original>
